<compile_context>
chip_gen: v5e
topology: v5e:2x2
jax: 0.10.0
libtpu: 0.0.40
codegen_flags: <defaults>
</compile_context>

<pallas_src>
import numpy as np

import jax
import jax.numpy as jnp
from jax.experimental import pallas as pl
from jax.experimental.pallas import tpu as pltpu


# ----------------------------------------------------------------------------
# Kernels
# ----------------------------------------------------------------------------
def _frgin_fused_kernel(
    x_ref, adj_ref, pool_ref,
    w1a_ref, b1a_ref, w1b_ref, b1b_ref,
    w2a_ref, b2a_ref, w2b_ref, b2b_ref,
    w3a_ref, b3a_ref, w3b_ref, b3b_ref,
    wbef_ref, bbef_ref, wmean_ref, bmean_ref,
    out_ref,
):
    """Whole forward in one call (small graphs, everything VMEM-resident)."""
    adj = adj_ref[...]  # bf16, self-loops already folded in (adj + I)

    def gin(h_bf16, wa, ba, wb, bb):
        # aggregation (+ self term via identity rows): bf16 x bf16 -> f32 MXU
        agg = jnp.dot(adj, h_bf16, preferred_element_type=jnp.float32)
        z = jnp.dot(agg, wa, preferred_element_type=jnp.float32) + ba
        z = jnp.maximum(z, 0.0)
        # second linear with eval-mode BatchNorm folded in
        return jnp.dot(z, wb, preferred_element_type=jnp.float32) + bb

    h = gin(x_ref[...], w1a_ref[...], b1a_ref[...], w1b_ref[...], b1b_ref[...])
    h = gin(h.astype(jnp.bfloat16),
            w2a_ref[...], b2a_ref[...], w2b_ref[...], b2b_ref[...])
    h = gin(h.astype(jnp.bfloat16),
            w3a_ref[...], b3a_ref[...], w3b_ref[...], b3b_ref[...])

    # global_mean_pool: pool [G, N] @ h [N, D]
    emb = jnp.dot(pool_ref[...], h, preferred_element_type=jnp.float32)
    e = jnp.dot(emb, wbef_ref[...], preferred_element_type=jnp.float32) + bbef_ref[...]
    e = jnp.maximum(e, 0.0)          # relu; dropout is identity in eval
    m = jnp.dot(e, wmean_ref[...], preferred_element_type=jnp.float32) + bmean_ref[...]
    out_ref[...] = 1.0 / (1.0 + jnp.exp(-m))


def _gin_layer_kernel(adj_ref, h_ref, wa_ref, ba_ref, wb_ref, bb_ref, out_ref):
    """One GIN layer over a row-tile of the adjacency (grid over node rows)."""
    # adj_ref: (TM, N) bf16 rows with self-loop folded in; h_ref: (N, F_in) bf16
    agg = jnp.dot(adj_ref[...], h_ref[...], preferred_element_type=jnp.float32)
    z = jnp.dot(agg, wa_ref[...], preferred_element_type=jnp.float32) + ba_ref[...]
    z = jnp.maximum(z, 0.0)
    z = jnp.dot(z, wb_ref[...], preferred_element_type=jnp.float32) + bb_ref[...]
    out_ref[...] = z.astype(out_ref.dtype)   # stored bf16 to feed the next agg


def _head_kernel(pool_ref, h_ref, wbef_ref, bbef_ref, wmean_ref, bmean_ref, out_ref):
    """Mean-pool + MLP head + sigmoid (tiny, fully resident)."""
    emb = jnp.dot(pool_ref[...], h_ref[...].astype(jnp.float32),
                  preferred_element_type=jnp.float32)
    e = jnp.dot(emb, wbef_ref[...], preferred_element_type=jnp.float32) + bbef_ref[...]
    e = jnp.maximum(e, 0.0)
    m = jnp.dot(e, wmean_ref[...], preferred_element_type=jnp.float32) + bmean_ref[...]
    out_ref[...] = 1.0 / (1.0 + jnp.exp(-m))


# ----------------------------------------------------------------------------
# Wrapper helpers
# ----------------------------------------------------------------------------
def _vmem_limit_bytes(*arrays):
    total = sum(int(a.size) * a.dtype.itemsize for a in arrays)
    # ~3x for double-buffering + temporaries, clamped to a cross-generation safe cap.
    return int(min(max(3 * total, 16 * 1024 * 1024), 64 * 1024 * 1024))


def _fold_params(params):
    """Fold eval-mode BatchNorm into the second linear of each GIN MLP."""
    fp = {}
    for l in (1, 2, 3):
        sc = params[f"bn{l}_scale"]
        sh = params[f"bn{l}_shift"]
        fp[f"w{l}a"] = params[f"w{l}a"]
        fp[f"b{l}a"] = params[f"b{l}a"]
        fp[f"w{l}b"] = params[f"w{l}b"] * sc          # per-output-channel scale
        fp[f"b{l}b"] = params[f"b{l}b"] * sc + sh
    fp["w_before"] = params["w_before"]
    fp["b_before"] = params["b_before"]
    fp["w_mean"] = params["w_mean"]
    fp["b_mean"] = params["b_mean"]
    return fp


def _gin_layer_tiled(adj_bf16, h_bf16, wa, ba, wb, bb, row_tile):
    n = adj_bf16.shape[0]
    f_in = h_bf16.shape[1]
    f_out = wb.shape[1]
    vmem_limit = _vmem_limit_bytes(adj_bf16, h_bf16, wa, ba, wb, bb)
    return pl.pallas_call(
        _gin_layer_kernel,
        out_shape=jax.ShapeDtypeStruct((n, f_out), jnp.bfloat16),
        grid_spec=pltpu.PrefetchScalarGridSpec(
            num_scalar_prefetch=0,
            grid=(pl.cdiv(n, row_tile),),
            in_specs=[
                pl.BlockSpec((row_tile, n), lambda i: (i, 0)),   # adj row tile
                pl.BlockSpec((n, f_in), lambda i: (0, 0)),       # full h (resident)
                pl.BlockSpec((f_in, f_out), lambda i: (0, 0)),
                pl.BlockSpec((1, f_out), lambda i: (0, 0)),
                pl.BlockSpec((f_out, f_out), lambda i: (0, 0)),
                pl.BlockSpec((1, f_out), lambda i: (0, 0)),
            ],
            out_specs=pl.BlockSpec((row_tile, f_out), lambda i: (i, 0)),
        ),
        compiler_params=pltpu.CompilerParams(
            dimension_semantics=("parallel",),   # rows independent -> v7x 2-TC split
            vmem_limit_bytes=vmem_limit,
        ),
    )(adj_bf16, h_bf16, wa, ba, wb, bb)


def _head_call(pool, h_bf16, wbef, bbef, wmean, bmean):
    g = pool.shape[0]
    vmem = pl.BlockSpec(memory_space=pltpu.MemorySpace.VMEM)
    return pl.pallas_call(
        _head_kernel,
        out_shape=jax.ShapeDtypeStruct((g, 1), jnp.float32),
        in_specs=[vmem] * 6,
        out_specs=vmem,
        compiler_params=pltpu.CompilerParams(
            vmem_limit_bytes=_vmem_limit_bytes(pool, h_bf16, wbef, bbef, wmean, bmean)),
    )(pool, h_bf16, wbef, bbef, wmean, bmean)


# ----------------------------------------------------------------------------
# Forward wrapper
# ----------------------------------------------------------------------------
def frgin_forward(x, edge_index, batch, params, num_graphs, row_tile=256):
    """x: [N, input_dim] f32, edge_index: [2, E] i32, batch: [N] i32."""
    n_nodes = x.shape[0]
    fp = _fold_params(params)

    # Dense adjacency with self-loops: adj'[dst, src] = #edges, adj'[i, i] += 1.
    # The identity fold implements the GIN "(1+eps)*h" self term (eps = 0).
    src, dst = edge_index[0], edge_index[1]
    adj = jnp.zeros((n_nodes, n_nodes), jnp.float32).at[dst, src].add(1.0)
    adj = adj + jnp.eye(n_nodes, dtype=jnp.float32)
    adj = adj.astype(jnp.bfloat16)          # small integers -> exact in bf16

    # Pooling matrix: pool[g, i] = 1/count_g if batch[i] == g  (kept f32, it's G x N)
    one_hot = (batch[None, :] == jnp.arange(num_graphs)[:, None]).astype(jnp.float32)
    pool = one_hot / jnp.maximum(one_hot.sum(axis=1, keepdims=True), 1.0)

    x_bf = x.astype(jnp.bfloat16)

    if n_nodes <= row_tile:
        # Small graphs: single fused call, everything VMEM-resident.
        ins = (
            x_bf, adj, pool,
            fp["w1a"], fp["b1a"], fp["w1b"], fp["b1b"],
            fp["w2a"], fp["b2a"], fp["w2b"], fp["b2b"],
            fp["w3a"], fp["b3a"], fp["w3b"], fp["b3b"],
            fp["w_before"], fp["b_before"], fp["w_mean"], fp["b_mean"],
        )
        vmem = pl.BlockSpec(memory_space=pltpu.MemorySpace.VMEM)
        return pl.pallas_call(
            _frgin_fused_kernel,
            out_shape=jax.ShapeDtypeStruct((num_graphs, 1), jnp.float32),
            in_specs=[vmem] * len(ins),
            out_specs=vmem,
            compiler_params=pltpu.CompilerParams(
                vmem_limit_bytes=_vmem_limit_bytes(*ins)),
        )(*ins)

    # Larger graphs: row-tiled, pipelined, per-layer calls (adj re-read 3x in bf16).
    h = x_bf
    for l in (1, 2, 3):
        h = _gin_layer_tiled(adj, h, fp[f"w{l}a"], fp[f"b{l}a"],
                             fp[f"w{l}b"], fp[f"b{l}b"], row_tile)
    return _head_call(pool, h, fp["w_before"], fp["b_before"],
                      fp["w_mean"], fp["b_mean"])


# ----------------------------------------------------------------------------
# Deterministic parameter construction (raw / unfolded)
# ----------------------------------------------------------------------------
def make_params(key, input_dim=6, encoder_dim=32, decoder_dim=16):
    ks = jax.random.split(key, 16)
    s = 0.1

    def lin(k, fan_in, fan_out):
        kw, kb = jax.random.split(k)
        w = s * jax.random.normal(kw, (fan_in, fan_out), jnp.float32)
        b = s * jax.random.normal(kb, (1, fan_out), jnp.float32)
        return w, b

    def bn(k, dim, eps=1e-5):
        kg, kb, km, kv = jax.random.split(k, 4)
        gamma = 1.0 + 0.1 * jax.random.normal(kg, (1, dim), jnp.float32)
        beta = 0.1 * jax.random.normal(kb, (1, dim), jnp.float32)
        rmean = 0.1 * jax.random.normal(km, (1, dim), jnp.float32)
        rvar = 1.0 + 0.1 * jax.random.uniform(kv, (1, dim), jnp.float32)
        scale = gamma / jnp.sqrt(rvar + eps)
        shift = beta - rmean * scale
        return scale, shift

    p = {}
    p["w1a"], p["b1a"] = lin(ks[0], input_dim, encoder_dim)
    p["w1b"], p["b1b"] = lin(ks[1], encoder_dim, encoder_dim)
    p["bn1_scale"], p["bn1_shift"] = bn(ks[2], encoder_dim)
    p["w2a"], p["b2a"] = lin(ks[3], encoder_dim, encoder_dim)
    p["w2b"], p["b2b"] = lin(ks[4], encoder_dim, encoder_dim)
    p["bn2_scale"], p["bn2_shift"] = bn(ks[5], encoder_dim)
    p["w3a"], p["b3a"] = lin(ks[6], encoder_dim, encoder_dim)
    p["w3b"], p["b3b"] = lin(ks[7], encoder_dim, encoder_dim)
    p["bn3_scale"], p["bn3_shift"] = bn(ks[8], encoder_dim)
    p["w_before"], p["b_before"] = lin(ks[9], encoder_dim, decoder_dim)
    p["w_mean"], p["b_mean"] = lin(ks[10], decoder_dim, 1)
    return p


# Pure-JAX f32 reference, mirroring the original PyTorch (eval-mode) semantics:
# explicit self-term, unfolded BatchNorm, no bf16.
def frgin_reference(x, edge_index, batch, params, num_graphs):
    n = x.shape[0]
    src, dst = edge_index[0], edge_index[1]
    adj = jnp.zeros((n, n), jnp.float32).at[dst, src].add(1.0)
    one_hot = (batch[None, :] == jnp.arange(num_graphs)[:, None]).astype(jnp.float32)
    pool = one_hot / jnp.maximum(one_hot.sum(axis=1, keepdims=True), 1.0)

    def gin(h, wa, ba, wb, bb, sc, sh):
        z = h + adj @ h
        z = jnp.maximum(z @ wa + ba, 0.0)
        z = z @ wb + bb
        return z * sc + sh

    h = gin(x, params["w1a"], params["b1a"], params["w1b"], params["b1b"],
            params["bn1_scale"], params["bn1_shift"])
    h = gin(h, params["w2a"], params["b2a"], params["w2b"], params["b2b"],
            params["bn2_scale"], params["bn2_shift"])
    h = gin(h, params["w3a"], params["b3a"], params["w3b"], params["b3b"],
            params["bn3_scale"], params["bn3_shift"])
    emb = pool @ h
    e = jnp.maximum(emb @ params["w_before"] + params["b_before"], 0.0)
    m = e @ params["w_mean"] + params["b_mean"]
    return jax.nn.sigmoid(m)


if __name__ == "__main__":
    key = jax.random.PRNGKey(0)
    kp, kx1, kx2 = jax.random.split(key, 3)

    input_dim, encoder_dim, decoder_dim = 6, 32, 16
    params = make_params(kp, input_dim, encoder_dim, decoder_dim)

    # --- Small test: fused single-call path (two 4-node bidirectional chains) ---
    num_nodes, num_graphs = 8, 2
    x = jax.random.normal(kx1, (num_nodes, input_dim), jnp.float32)
    edge_index = jnp.array(
        [[0, 1, 1, 2, 2, 3, 4, 5, 5, 6, 6, 7],
         [1, 0, 2, 1, 3, 2, 5, 4, 6, 5, 7, 6]], dtype=jnp.int32)
    batch = jnp.array([0, 0, 0, 0, 1, 1, 1, 1], dtype=jnp.int32)

    out = jax.block_until_ready(frgin_forward(x, edge_index, batch, params, num_graphs))
    ref = frgin_reference(x, edge_index, batch, params, num_graphs)
    assert out.shape == (num_graphs, 1)
    assert jnp.allclose(out, ref, atol=1e-2, rtol=1e-2), (out, ref)

    # --- Medium test: row-tiled, pipelined, "parallel" grid path ---
    n_per, num_graphs2 = 128, 4
    n2 = n_per * num_graphs2                     # 512 nodes, 4 chain graphs
    x2 = jax.random.normal(kx2, (n2, input_dim), jnp.float32)
    base = np.arange(n2 - 1)
    keep = (base + 1) % n_per != 0               # no edges across graph boundaries
    s_np, d_np = base[keep], base[keep] + 1
    edge_index2 = jnp.asarray(
        np.stack([np.concatenate([s_np, d_np]), np.concatenate([d_np, s_np])]),
        dtype=jnp.int32)
    batch2 = jnp.asarray(np.repeat(np.arange(num_graphs2), n_per), dtype=jnp.int32)

    out2 = jax.block_until_ready(
        frgin_forward(x2, edge_index2, batch2, params, num_graphs2, row_tile=256))
    ref2 = frgin_reference(x2, edge_index2, batch2, params, num_graphs2)
    assert out2.shape == (num_graphs2, 1)
    assert jnp.allclose(out2, ref2, atol=1e-2, rtol=1e-2), (out2, ref2)

    print("KERNEL_OK")
</pallas_src>

<mosaic_0001>
module attributes {stable_mosaic.version = 11 : i64} {
  func.func @_frgin_fused_kernel(%arg0: memref<8x6xbf16, #tpu.memory_space<vmem>>, %arg1: memref<8x8xbf16, #tpu.memory_space<vmem>>, %arg2: memref<2x8xf32, #tpu.memory_space<vmem>>, %arg3: memref<6x32xf32, #tpu.memory_space<vmem>>, %arg4: memref<1x32xf32, #tpu.memory_space<vmem>>, %arg5: memref<32x32xf32, #tpu.memory_space<vmem>>, %arg6: memref<1x32xf32, #tpu.memory_space<vmem>>, %arg7: memref<32x32xf32, #tpu.memory_space<vmem>>, %arg8: memref<1x32xf32, #tpu.memory_space<vmem>>, %arg9: memref<32x32xf32, #tpu.memory_space<vmem>>, %arg10: memref<1x32xf32, #tpu.memory_space<vmem>>, %arg11: memref<32x32xf32, #tpu.memory_space<vmem>>, %arg12: memref<1x32xf32, #tpu.memory_space<vmem>>, %arg13: memref<32x32xf32, #tpu.memory_space<vmem>>, %arg14: memref<1x32xf32, #tpu.memory_space<vmem>>, %arg15: memref<32x16xf32, #tpu.memory_space<vmem>>, %arg16: memref<1x16xf32, #tpu.memory_space<vmem>>, %arg17: memref<16x1xf32, #tpu.memory_space<vmem>>, %arg18: memref<1x1xf32, #tpu.memory_space<vmem>>, %arg19: memref<2x1xf32, #tpu.memory_space<vmem>>) attributes {dimension_semantics = [], scalar_prefetch = 0 : i64, scratch_operands = 0 : i64, tpu.core_type = #tpu.core_type<tc>} {
    %c0 = arith.constant 0 : index
    %c0_0 = arith.constant 0 : index
    %0 = vector.load %arg1[%c0, %c0_0] : memref<8x8xbf16, #tpu.memory_space<vmem>>, vector<8x8xbf16>
    %c0_1 = arith.constant 0 : index
    %c0_2 = arith.constant 0 : index
    %1 = vector.load %arg0[%c0_1, %c0_2] : memref<8x6xbf16, #tpu.memory_space<vmem>>, vector<8x6xbf16>
    %c0_3 = arith.constant 0 : index
    %c0_4 = arith.constant 0 : index
    %2 = vector.load %arg3[%c0_3, %c0_4] : memref<6x32xf32, #tpu.memory_space<vmem>>, vector<6x32xf32>
    %c0_5 = arith.constant 0 : index
    %c0_6 = arith.constant 0 : index
    %3 = vector.load %arg4[%c0_5, %c0_6] : memref<1x32xf32, #tpu.memory_space<vmem>>, vector<1x32xf32>
    %c0_7 = arith.constant 0 : index
    %c0_8 = arith.constant 0 : index
    %4 = vector.load %arg5[%c0_7, %c0_8] : memref<32x32xf32, #tpu.memory_space<vmem>>, vector<32x32xf32>
    %c0_9 = arith.constant 0 : index
    %c0_10 = arith.constant 0 : index
    %5 = vector.load %arg6[%c0_9, %c0_10] : memref<1x32xf32, #tpu.memory_space<vmem>>, vector<1x32xf32>
    %cst = arith.constant dense<0.000000e+00> : vector<8x6xf32>
    %6 = tpu.matmul %0, %1, %cst {dimension_numbers = #tpu.dot_dimension_numbers<[1], [0], [0], [1], [0, 0, 1, 1], [], []>} : vector<8x8xbf16>, vector<8x6xbf16>, vector<8x6xf32> -> vector<8x6xf32>
    %cst_11 = arith.constant dense<0.000000e+00> : vector<8x32xf32>
    %7 = tpu.matmul %6, %2, %cst_11 {dimension_numbers = #tpu.dot_dimension_numbers<[1], [0], [0], [1], [0, 0, 1, 1], [], []>} : vector<8x6xf32>, vector<6x32xf32>, vector<8x32xf32> -> vector<8x32xf32>
    %8 = vector.broadcast %3 : vector<1x32xf32> to vector<8x32xf32>
    %9 = arith.addf %7, %8 : vector<8x32xf32>
    %cst_12 = arith.constant 0.000000e+00 : f32
    %10 = vector.broadcast %cst_12 : f32 to vector<8x32xf32>
    %11 = arith.maximumf %9, %10 : vector<8x32xf32>
    %cst_13 = arith.constant dense<0.000000e+00> : vector<8x32xf32>
    %12 = tpu.matmul %11, %4, %cst_13 {dimension_numbers = #tpu.dot_dimension_numbers<[1], [0], [0], [1], [0, 0, 1, 1], [], []>} : vector<8x32xf32>, vector<32x32xf32>, vector<8x32xf32> -> vector<8x32xf32>
    %13 = vector.broadcast %5 : vector<1x32xf32> to vector<8x32xf32>
    %14 = arith.addf %12, %13 : vector<8x32xf32>
    %15 = arith.truncf %14 : vector<8x32xf32> to vector<8x32xbf16>
    %c0_14 = arith.constant 0 : index
    %c0_15 = arith.constant 0 : index
    %16 = vector.load %arg7[%c0_14, %c0_15] : memref<32x32xf32, #tpu.memory_space<vmem>>, vector<32x32xf32>
    %c0_16 = arith.constant 0 : index
    %c0_17 = arith.constant 0 : index
    %17 = vector.load %arg8[%c0_16, %c0_17] : memref<1x32xf32, #tpu.memory_space<vmem>>, vector<1x32xf32>
    %c0_18 = arith.constant 0 : index
    %c0_19 = arith.constant 0 : index
    %18 = vector.load %arg9[%c0_18, %c0_19] : memref<32x32xf32, #tpu.memory_space<vmem>>, vector<32x32xf32>
    %c0_20 = arith.constant 0 : index
    %c0_21 = arith.constant 0 : index
    %19 = vector.load %arg10[%c0_20, %c0_21] : memref<1x32xf32, #tpu.memory_space<vmem>>, vector<1x32xf32>
    %cst_22 = arith.constant dense<0.000000e+00> : vector<8x32xf32>
    %20 = tpu.matmul %0, %15, %cst_22 {dimension_numbers = #tpu.dot_dimension_numbers<[1], [0], [0], [1], [0, 0, 1, 1], [], []>} : vector<8x8xbf16>, vector<8x32xbf16>, vector<8x32xf32> -> vector<8x32xf32>
    %cst_23 = arith.constant dense<0.000000e+00> : vector<8x32xf32>
    %21 = tpu.matmul %20, %16, %cst_23 {dimension_numbers = #tpu.dot_dimension_numbers<[1], [0], [0], [1], [0, 0, 1, 1], [], []>} : vector<8x32xf32>, vector<32x32xf32>, vector<8x32xf32> -> vector<8x32xf32>
    %22 = vector.broadcast %17 : vector<1x32xf32> to vector<8x32xf32>
    %23 = arith.addf %21, %22 : vector<8x32xf32>
    %cst_24 = arith.constant 0.000000e+00 : f32
    %24 = vector.broadcast %cst_24 : f32 to vector<8x32xf32>
    %25 = arith.maximumf %23, %24 : vector<8x32xf32>
    %cst_25 = arith.constant dense<0.000000e+00> : vector<8x32xf32>
    %26 = tpu.matmul %25, %18, %cst_25 {dimension_numbers = #tpu.dot_dimension_numbers<[1], [0], [0], [1], [0, 0, 1, 1], [], []>} : vector<8x32xf32>, vector<32x32xf32>, vector<8x32xf32> -> vector<8x32xf32>
    %27 = vector.broadcast %19 : vector<1x32xf32> to vector<8x32xf32>
    %28 = arith.addf %26, %27 : vector<8x32xf32>
    %29 = arith.truncf %28 : vector<8x32xf32> to vector<8x32xbf16>
    %c0_26 = arith.constant 0 : index
    %c0_27 = arith.constant 0 : index
    %30 = vector.load %arg11[%c0_26, %c0_27] : memref<32x32xf32, #tpu.memory_space<vmem>>, vector<32x32xf32>
    %c0_28 = arith.constant 0 : index
    %c0_29 = arith.constant 0 : index
    %31 = vector.load %arg12[%c0_28, %c0_29] : memref<1x32xf32, #tpu.memory_space<vmem>>, vector<1x32xf32>
    %c0_30 = arith.constant 0 : index
    %c0_31 = arith.constant 0 : index
    %32 = vector.load %arg13[%c0_30, %c0_31] : memref<32x32xf32, #tpu.memory_space<vmem>>, vector<32x32xf32>
    %c0_32 = arith.constant 0 : index
    %c0_33 = arith.constant 0 : index
    %33 = vector.load %arg14[%c0_32, %c0_33] : memref<1x32xf32, #tpu.memory_space<vmem>>, vector<1x32xf32>
    %cst_34 = arith.constant dense<0.000000e+00> : vector<8x32xf32>
    %34 = tpu.matmul %0, %29, %cst_34 {dimension_numbers = #tpu.dot_dimension_numbers<[1], [0], [0], [1], [0, 0, 1, 1], [], []>} : vector<8x8xbf16>, vector<8x32xbf16>, vector<8x32xf32> -> vector<8x32xf32>
    %cst_35 = arith.constant dense<0.000000e+00> : vector<8x32xf32>
    %35 = tpu.matmul %34, %30, %cst_35 {dimension_numbers = #tpu.dot_dimension_numbers<[1], [0], [0], [1], [0, 0, 1, 1], [], []>} : vector<8x32xf32>, vector<32x32xf32>, vector<8x32xf32> -> vector<8x32xf32>
    %36 = vector.broadcast %31 : vector<1x32xf32> to vector<8x32xf32>
    %37 = arith.addf %35, %36 : vector<8x32xf32>
    %cst_36 = arith.constant 0.000000e+00 : f32
    %38 = vector.broadcast %cst_36 : f32 to vector<8x32xf32>
    %39 = arith.maximumf %37, %38 : vector<8x32xf32>
    %cst_37 = arith.constant dense<0.000000e+00> : vector<8x32xf32>
    %40 = tpu.matmul %39, %32, %cst_37 {dimension_numbers = #tpu.dot_dimension_numbers<[1], [0], [0], [1], [0, 0, 1, 1], [], []>} : vector<8x32xf32>, vector<32x32xf32>, vector<8x32xf32> -> vector<8x32xf32>
    %41 = vector.broadcast %33 : vector<1x32xf32> to vector<8x32xf32>
    %42 = arith.addf %40, %41 : vector<8x32xf32>
    %c0_38 = arith.constant 0 : index
    %c0_39 = arith.constant 0 : index
    %43 = vector.load %arg2[%c0_38, %c0_39] : memref<2x8xf32, #tpu.memory_space<vmem>>, vector<2x8xf32>
    %cst_40 = arith.constant dense<0.000000e+00> : vector<2x32xf32>
    %44 = tpu.matmul %43, %42, %cst_40 {dimension_numbers = #tpu.dot_dimension_numbers<[1], [0], [0], [1], [0, 0, 1, 1], [], []>} : vector<2x8xf32>, vector<8x32xf32>, vector<2x32xf32> -> vector<2x32xf32>
    %c0_41 = arith.constant 0 : index
    %c0_42 = arith.constant 0 : index
    %45 = vector.load %arg15[%c0_41, %c0_42] : memref<32x16xf32, #tpu.memory_space<vmem>>, vector<32x16xf32>
    %cst_43 = arith.constant dense<0.000000e+00> : vector<2x16xf32>
    %46 = tpu.matmul %44, %45, %cst_43 {dimension_numbers = #tpu.dot_dimension_numbers<[1], [0], [0], [1], [0, 0, 1, 1], [], []>} : vector<2x32xf32>, vector<32x16xf32>, vector<2x16xf32> -> vector<2x16xf32>
    %c0_44 = arith.constant 0 : index
    %c0_45 = arith.constant 0 : index
    %47 = vector.load %arg16[%c0_44, %c0_45] : memref<1x16xf32, #tpu.memory_space<vmem>>, vector<1x16xf32>
    %48 = vector.broadcast %47 : vector<1x16xf32> to vector<2x16xf32>
    %49 = arith.addf %46, %48 : vector<2x16xf32>
    %cst_46 = arith.constant 0.000000e+00 : f32
    %50 = vector.broadcast %cst_46 : f32 to vector<2x16xf32>
    %51 = arith.maximumf %49, %50 : vector<2x16xf32>
    %c0_47 = arith.constant 0 : index
    %c0_48 = arith.constant 0 : index
    %52 = vector.load %arg17[%c0_47, %c0_48] : memref<16x1xf32, #tpu.memory_space<vmem>>, vector<16x1xf32>
    %cst_49 = arith.constant dense<0.000000e+00> : vector<2x1xf32>
    %53 = tpu.matmul %51, %52, %cst_49 {dimension_numbers = #tpu.dot_dimension_numbers<[1], [0], [0], [1], [0, 0, 1, 1], [], []>} : vector<2x16xf32>, vector<16x1xf32>, vector<2x1xf32> -> vector<2x1xf32>
    %c0_50 = arith.constant 0 : index
    %c0_51 = arith.constant 0 : index
    %54 = vector.load %arg18[%c0_50, %c0_51] : memref<1x1xf32, #tpu.memory_space<vmem>>, vector<1x1xf32>
    %55 = vector.broadcast %54 : vector<1x1xf32> to vector<2x1xf32>
    %56 = arith.addf %53, %55 : vector<2x1xf32>
    %cst_52 = arith.constant 0.000000e+00 : f32
    %57 = vector.broadcast %cst_52 : f32 to vector<2x1xf32>
    %58 = arith.subf %57, %56 : vector<2x1xf32>
    %59 = math.exp %58 : vector<2x1xf32>
    %cst_53 = arith.constant 1.000000e+00 : f32
    %60 = vector.broadcast %cst_53 : f32 to vector<2x1xf32>
    %61 = arith.addf %60, %59 : vector<2x1xf32>
    %cst_54 = arith.constant 1.000000e+00 : f32
    %62 = vector.broadcast %cst_54 : f32 to vector<2x1xf32>
    %63 = arith.divf %62, %61 : vector<2x1xf32>
    %c0_55 = arith.constant 0 : index
    %c0_56 = arith.constant 0 : index
    %64 = vector.load %arg19[%c0_55, %c0_56] : memref<2x1xf32, #tpu.memory_space<vmem>>, vector<2x1xf32>
    tpu.vector_store %arg19[%c0_55, %c0_56], %63 {strides = array<i32>} : memref<2x1xf32, #tpu.memory_space<vmem>>, vector<2x1xf32>,
    return
  }
}

</mosaic_0001>

<llo_original>
// kernel: tpu_custom_call.1
$region0: #{tpu_custom_call.1}
  #allocation0 [shape = 'u32[]', space=smem, size = 0x4, offset = 0x4, fixed_abs, tag = 'smem constant byte address 0x4 - core index']
  #allocation1 [shape = 'u32[72,128]{1,0:T(1,128)}', space=vmem, size = 0x9000, scoped, tag = 'internal scratch']
  #allocation2 [shape = 'f32[1,1]{1,0:T(1,128)S(1)}', space=vmem, size = 0x200, scoped, tag = 'scoped memory for tpu_custom_call.1']
  %s0 = inlined_call_operand.hbm [shape: bf16[8,6], index: 0, kind: input, shape index: {}]
  %s1 = inlined_call_operand.hbm [shape: bf16[8,8], index: 1, kind: input, shape index: {}]
  %s2 = inlined_call_operand.hbm [shape: f32[2,8], index: 2, kind: input, shape index: {}]
  %s3 = inlined_call_operand.hbm [shape: f32[6,32], index: 3, kind: input, shape index: {}]
  %s4 = inlined_call_operand.hbm [shape: f32[1,32], index: 4, kind: input, shape index: {}]
  %s5 = inlined_call_operand.vmem [shape: f32[32,32], index: 5, kind: input, shape index: {}]
  %s6 = inlined_call_operand.hbm [shape: f32[1,32], index: 6, kind: input, shape index: {}]
  %s7 = inlined_call_operand.vmem [shape: f32[32,32], index: 7, kind: input, shape index: {}]
  %s8 = inlined_call_operand.hbm [shape: f32[1,32], index: 8, kind: input, shape index: {}]
  %s9 = inlined_call_operand.hbm [shape: f32[32,32], index: 9, kind: input, shape index: {}]
  %s10 = inlined_call_operand.hbm [shape: f32[1,32], index: 10, kind: input, shape index: {}]
  %s11 = inlined_call_operand.hbm [shape: f32[32,32], index: 11, kind: input, shape index: {}]
  %s12 = inlined_call_operand.hbm [shape: f32[1,32], index: 12, kind: input, shape index: {}]
  %s13 = inlined_call_operand.hbm [shape: f32[32,32], index: 13, kind: input, shape index: {}]
  %s14 = inlined_call_operand.hbm [shape: f32[1,32], index: 14, kind: input, shape index: {}]
  %s15 = inlined_call_operand.vmem [shape: f32[32,16], index: 15, kind: input, shape index: {}]
  %s16 = inlined_call_operand.vmem [shape: f32[1,16], index: 16, kind: input, shape index: {}]
  %s17 = inlined_call_operand.vmem [shape: f32[16,1], index: 17, kind: input, shape index: {}]
  %s18 = inlined_call_operand.<no memory space> [shape: f32[1,1], index: 18, kind: input, shape index: {}]
  %s19 = inlined_call_operand.vmem [shape: f32[2,1], index: 19, kind: output, shape index: {}]
  %s20 = sld [smem:[#allocation0]]
  $region138: #{tpu_custom_call.1} parent=0
    _
  %s22 = ssub.s32 1, %s20
  %s23 = scalar_select 0, %s22, %s20
  %v24 = vstv %s18
  %25 = vst [vmem:[#allocation2] sm:$0x1] %v24
  $region1: #{tpu_custom_call.1} parent=0
    #allocation3 [shape = 'u8[2048]{0}', space=vmem, size = 0x800, scoped, tag = 'input window, operand 0, single buffered']
    #allocation4 [shape = 's32[1]{0}', space=sflag, size = 0x4, scoped, tag = 'scoped memory for tpu_custom_call.1']
    #allocation5 [shape = 'u8[2048]{0}', space=vmem, size = 0x800, scoped, tag = 'input window, operand 1, single buffered']
    #allocation6 [shape = 's32[1]{0}', space=sflag, size = 0x4, scoped, tag = 'scoped memory for tpu_custom_call.1']
    #allocation7 [shape = 'u8[1024]{0}', space=vmem, size = 0x400, scoped, tag = 'input window, operand 2, single buffered']
    #allocation8 [shape = 'u8[4096]{0}', space=vmem, size = 0x1000, scoped, tag = 'input window, operand 3, single buffered']
    #allocation9 [shape = 's32[1]{0}', space=sflag, size = 0x4, scoped, tag = 'scoped memory for tpu_custom_call.1']
    #allocation10 [shape = 'u8[512]{0}', space=vmem, size = 0x400, scoped, tag = 'input window, operand 4, single buffered']
    #allocation11 [shape = 'u8[512]{0}', space=vmem, size = 0x400, scoped, tag = 'input window, operand 6, single buffered']
    #allocation12 [shape = 's32[1]{0}', space=sflag, size = 0x4, scoped, tag = 'scoped memory for tpu_custom_call.1']
    #allocation13 [shape = 'u8[512]{0}', space=vmem, size = 0x400, scoped, tag = 'input window, operand 8, single buffered']
    #allocation14 [shape = 'u8[16384]{0}', space=vmem, size = 0x4000, scoped, tag = 'input window, operand 9, single buffered']
    #allocation15 [shape = 's32[1]{0}', space=sflag, size = 0x4, scoped, tag = 'scoped memory for tpu_custom_call.1']
    #allocation16 [shape = 'u8[512]{0}', space=vmem, size = 0x400, scoped, tag = 'input window, operand 10, single buffered']
    #allocation17 [shape = 'u8[16384]{0}', space=vmem, size = 0x4000, scoped, tag = 'input window, operand 11, single buffered']
    #allocation18 [shape = 's32[1]{0}', space=sflag, size = 0x4, scoped, tag = 'scoped memory for tpu_custom_call.1']
    #allocation19 [shape = 'u8[512]{0}', space=vmem, size = 0x400, scoped, tag = 'input window, operand 12, single buffered']
    #allocation20 [shape = 'u8[16384]{0}', space=vmem, size = 0x4000, scoped, tag = 'input window, operand 13, single buffered']
    #allocation21 [shape = 's32[1]{0}', space=sflag, size = 0x4, scoped, tag = 'scoped memory for tpu_custom_call.1']
    #allocation22 [shape = 'u8[512]{0}', space=vmem, size = 0x400, scoped, tag = 'input window, operand 14, single buffered']
    %26 = vsyncpa [#allocation4], 0
    %27 = vsyncpa [#allocation6], 0
    %28 = vsyncpa [#allocation9], 0
    %29 = vsyncpa [#allocation12], 0
    %30 = vsyncpa [#allocation15], 0
    %31 = vsyncpa [#allocation18], 0
    %32 = vsyncpa [#allocation21], 0
    // Predicated region
    $region2: #{tpu_custom_call.1} parent=1 // pred_check
      _
    $region3: #{tpu_custom_call.1} parent=1 // pred_check_branch
      %34 = sbr.rel (0) target = $region5
    $region4: #{tpu_custom_call.1} parent=1 // pred_region
      %36 = vsyncadd [#allocation4], 0
      %s38 = sshll.u32 %s0, 4
      %s39 = int_to_ptr.hbm [resolvable:$true] %s38
      %s40 = sshll.u32 [#allocation3], 4
      %s41 = int_to_ptr.vmem [resolvable:$true] %s40
      %43 = dma.hbm_to_vmem [thread:$0]  %s39, 64, %s41, [#allocation4]
    $region5: #{tpu_custom_call.1} parent=1 // pred_fallthru
      _
    // Predicated region
    $region6: #{tpu_custom_call.1} parent=1 // pred_check
      _
    $region7: #{tpu_custom_call.1} parent=1 // pred_check_branch
      %45 = sbr.rel (0) target = $region9
    $region8: #{tpu_custom_call.1} parent=1 // pred_region
      %47 = vsyncadd [#allocation6], 0
      %s49 = sshll.u32 %s1, 4
      %s50 = int_to_ptr.hbm [resolvable:$true] %s49
      %s51 = sshll.u32 [#allocation5], 4
      %s52 = int_to_ptr.vmem [resolvable:$true] %s51
      %54 = dma.hbm_to_vmem [thread:$0]  %s50, 64, %s52, [#allocation6]
    $region9: #{tpu_custom_call.1} parent=1 // pred_fallthru
      _
    // Predicated region
    $region10: #{tpu_custom_call.1} parent=1 // pred_check
      _
    $region11: #{tpu_custom_call.1} parent=1 // pred_check_branch
      %56 = sbr.rel (0) target = $region13
    $region12: #{tpu_custom_call.1} parent=1 // pred_region
      %58 = vsyncadd [#allocation6], 0
      %s60 = sshll.u32 %s2, 4
      %s61 = int_to_ptr.hbm [resolvable:$true] %s60
      %s62 = sshll.u32 [#allocation7], 4
      %s63 = int_to_ptr.vmem [resolvable:$true] %s62
      %65 = dma.hbm_to_vmem [thread:$0]  %s61, 32, %s63, [#allocation6]
    $region13: #{tpu_custom_call.1} parent=1 // pred_fallthru
      _
    // Predicated region
    $region14: #{tpu_custom_call.1} parent=1 // pred_check
      _
    $region15: #{tpu_custom_call.1} parent=1 // pred_check_branch
      %67 = sbr.rel (0) target = $region17
    $region16: #{tpu_custom_call.1} parent=1 // pred_region
      %69 = vsyncadd [#allocation9], 0
      %s71 = sshll.u32 %s3, 4
      %s72 = int_to_ptr.hbm [resolvable:$true] %s71
      %s73 = sshll.u32 [#allocation8], 4
      %s74 = int_to_ptr.vmem [resolvable:$true] %s73
      %76 = dma.hbm_to_vmem [thread:$0]  %s72, 128, %s74, [#allocation9]
    $region17: #{tpu_custom_call.1} parent=1 // pred_fallthru
      _
    // Predicated region
    $region18: #{tpu_custom_call.1} parent=1 // pred_check
      _
    $region19: #{tpu_custom_call.1} parent=1 // pred_check_branch
      %78 = sbr.rel (0) target = $region21
    $region20: #{tpu_custom_call.1} parent=1 // pred_region
      %80 = vsyncadd [#allocation9], 0
      %s82 = sshll.u32 %s4, 4
      %s83 = int_to_ptr.hbm [resolvable:$true] %s82
      %s84 = sshll.u32 [#allocation10], 4
      %s85 = int_to_ptr.vmem [resolvable:$true] %s84
      %87 = dma.hbm_to_vmem [thread:$0]  %s83, 16, %s85, [#allocation9]
    $region21: #{tpu_custom_call.1} parent=1 // pred_fallthru
      _
    // Predicated region
    $region22: #{tpu_custom_call.1} parent=1 // pred_check
      _
    $region23: #{tpu_custom_call.1} parent=1 // pred_check_branch
      %89 = sbr.rel (0) target = $region25
    $region24: #{tpu_custom_call.1} parent=1 // pred_region
      _
    $region25: #{tpu_custom_call.1} parent=1 // pred_fallthru
      _
    // Predicated region
    $region26: #{tpu_custom_call.1} parent=1 // pred_check
      _
    $region27: #{tpu_custom_call.1} parent=1 // pred_check_branch
      %91 = sbr.rel (0) target = $region29
    $region28: #{tpu_custom_call.1} parent=1 // pred_region
      %93 = vsyncadd [#allocation12], 0
      %s95 = sshll.u32 %s6, 4
      %s96 = int_to_ptr.hbm [resolvable:$true] %s95
      %s97 = sshll.u32 [#allocation11], 4
      %s98 = int_to_ptr.vmem [resolvable:$true] %s97
      %100 = dma.hbm_to_vmem [thread:$0]  %s96, 16, %s98, [#allocation12]
    $region29: #{tpu_custom_call.1} parent=1 // pred_fallthru
      _
    // Predicated region
    $region30: #{tpu_custom_call.1} parent=1 // pred_check
      _
    $region31: #{tpu_custom_call.1} parent=1 // pred_check_branch
      %102 = sbr.rel (0) target = $region33
    $region32: #{tpu_custom_call.1} parent=1 // pred_region
      _
    $region33: #{tpu_custom_call.1} parent=1 // pred_fallthru
      _
    // Predicated region
    $region34: #{tpu_custom_call.1} parent=1 // pred_check
      _
    $region35: #{tpu_custom_call.1} parent=1 // pred_check_branch
      %104 = sbr.rel (0) target = $region37
    $region36: #{tpu_custom_call.1} parent=1 // pred_region
      %106 = vsyncadd [#allocation12], 0
      %s108 = sshll.u32 %s8, 4
      %s109 = int_to_ptr.hbm [resolvable:$true] %s108
      %s110 = sshll.u32 [#allocation13], 4
      %s111 = int_to_ptr.vmem [resolvable:$true] %s110
      %113 = dma.hbm_to_vmem [thread:$0]  %s109, 16, %s111, [#allocation12]
    $region37: #{tpu_custom_call.1} parent=1 // pred_fallthru
      _
    // Predicated region
    $region38: #{tpu_custom_call.1} parent=1 // pred_check
      _
    $region39: #{tpu_custom_call.1} parent=1 // pred_check_branch
      %115 = sbr.rel (0) target = $region41
    $region40: #{tpu_custom_call.1} parent=1 // pred_region
      %117 = vsyncadd [#allocation15], 0
      %s118 = sshll.u32 %s9, 4
      %s119 = int_to_ptr.hbm [resolvable:$true] %s118
      %s120 = sshll.u32 [#allocation14], 4
      %s121 = int_to_ptr.vmem [resolvable:$true] %s120
      %126 = dma.hbm_to_vmem [thread:$0]  %s119, 512, %s121, [#allocation15], 128, 128, 8
    $region41: #{tpu_custom_call.1} parent=1 // pred_fallthru
      _
    // Predicated region
    $region42: #{tpu_custom_call.1} parent=1 // pred_check
      _
    $region43: #{tpu_custom_call.1} parent=1 // pred_check_branch
      %128 = sbr.rel (0) target = $region45
    $region44: #{tpu_custom_call.1} parent=1 // pred_region
      %130 = vsyncadd [#allocation15], 0
      %s132 = sshll.u32 %s10, 4
      %s133 = int_to_ptr.hbm [resolvable:$true] %s132
      %s134 = sshll.u32 [#allocation16], 4
      %s135 = int_to_ptr.vmem [resolvable:$true] %s134
      %137 = dma.hbm_to_vmem [thread:$0]  %s133, 16, %s135, [#allocation15]
    $region45: #{tpu_custom_call.1} parent=1 // pred_fallthru
      _
    // Predicated region
    $region46: #{tpu_custom_call.1} parent=1 // pred_check
      _
    $region47: #{tpu_custom_call.1} parent=1 // pred_check_branch
      %139 = sbr.rel (0) target = $region49
    $region48: #{tpu_custom_call.1} parent=1 // pred_region
      %141 = vsyncadd [#allocation18], 0
      %s142 = sshll.u32 %s11, 4
      %s143 = int_to_ptr.hbm [resolvable:$true] %s142
      %s144 = sshll.u32 [#allocation17], 4
      %s145 = int_to_ptr.vmem [resolvable:$true] %s144
      %150 = dma.hbm_to_vmem [thread:$0]  %s143, 512, %s145, [#allocation18], 128, 128, 8
    $region49: #{tpu_custom_call.1} parent=1 // pred_fallthru
      _
    // Predicated region
    $region50: #{tpu_custom_call.1} parent=1 // pred_check
      _
    $region51: #{tpu_custom_call.1} parent=1 // pred_check_branch
      %152 = sbr.rel (0) target = $region53
    $region52: #{tpu_custom_call.1} parent=1 // pred_region
      %154 = vsyncadd [#allocation18], 0
      %s156 = sshll.u32 %s12, 4
      %s157 = int_to_ptr.hbm [resolvable:$true] %s156
      %s158 = sshll.u32 [#allocation19], 4
      %s159 = int_to_ptr.vmem [resolvable:$true] %s158
      %161 = dma.hbm_to_vmem [thread:$0]  %s157, 16, %s159, [#allocation18]
    $region53: #{tpu_custom_call.1} parent=1 // pred_fallthru
      _
    // Predicated region
    $region54: #{tpu_custom_call.1} parent=1 // pred_check
      _
    $region55: #{tpu_custom_call.1} parent=1 // pred_check_branch
      %163 = sbr.rel (0) target = $region57
    $region56: #{tpu_custom_call.1} parent=1 // pred_region
      %165 = vsyncadd [#allocation21], 0
      %s166 = sshll.u32 %s13, 4
      %s167 = int_to_ptr.hbm [resolvable:$true] %s166
      %s168 = sshll.u32 [#allocation20], 4
      %s169 = int_to_ptr.vmem [resolvable:$true] %s168
      %174 = dma.hbm_to_vmem [thread:$0]  %s167, 512, %s169, [#allocation21], 128, 128, 8
    $region57: #{tpu_custom_call.1} parent=1 // pred_fallthru
      _
    // Predicated region
    $region58: #{tpu_custom_call.1} parent=1 // pred_check
      _
    $region59: #{tpu_custom_call.1} parent=1 // pred_check_branch
      %176 = sbr.rel (0) target = $region61
    $region60: #{tpu_custom_call.1} parent=1 // pred_region
      %178 = vsyncadd [#allocation21], 0
      %s180 = sshll.u32 %s14, 4
      %s181 = int_to_ptr.hbm [resolvable:$true] %s180
      %s182 = sshll.u32 [#allocation22], 4
      %s183 = int_to_ptr.vmem [resolvable:$true] %s182
      %185 = dma.hbm_to_vmem [thread:$0]  %s181, 16, %s183, [#allocation21]
    $region61: #{tpu_custom_call.1} parent=1 // pred_fallthru
      _
    // Predicated region
    $region62: #{tpu_custom_call.1} parent=1 // pred_check
      _
    $region63: #{tpu_custom_call.1} parent=1 // pred_check_branch
      %187 = sbr.rel (0) target = $region65
    $region64: #{tpu_custom_call.1} parent=1 // pred_region
      _
    $region65: #{tpu_custom_call.1} parent=1 // pred_fallthru
      _
    // Predicated region
    $region66: #{tpu_custom_call.1} parent=1 // pred_check
      _
    $region67: #{tpu_custom_call.1} parent=1 // pred_check_branch
      %189 = sbr.rel (0) target = $region69
    $region68: #{tpu_custom_call.1} parent=1 // pred_region
      _
    $region69: #{tpu_custom_call.1} parent=1 // pred_fallthru
      _
    // Predicated region
    $region70: #{tpu_custom_call.1} parent=1 // pred_check
      _
    $region71: #{tpu_custom_call.1} parent=1 // pred_check_branch
      %191 = sbr.rel (0) target = $region73
    $region72: #{tpu_custom_call.1} parent=1 // pred_region
      _
    $region73: #{tpu_custom_call.1} parent=1 // pred_fallthru
      _
    // Predicated region
    $region74: #{tpu_custom_call.1} parent=1 // pred_check
      _
    $region75: #{tpu_custom_call.1} parent=1 // pred_check_branch
      %193 = sbr.rel (0) target = $region77
    $region76: #{tpu_custom_call.1} parent=1 // pred_region
      _
    $region77: #{tpu_custom_call.1} parent=1 // pred_fallthru
      _
    // Predicated region
    $region78: #{tpu_custom_call.1} parent=1 // pred_check
      _
    $region79: #{tpu_custom_call.1} parent=1 // pred_check_branch
      %195 = sbr.rel (0) target = $region81
    $region80: #{tpu_custom_call.1} parent=1 // pred_region
      %197 = dma.done [#allocation4], 64
    $region81: #{tpu_custom_call.1} parent=1 // pred_fallthru
      _
    // Predicated region
    $region82: #{tpu_custom_call.1} parent=1 // pred_check
      _
    $region83: #{tpu_custom_call.1} parent=1 // pred_check_branch
      %199 = sbr.rel (0) target = $region85
    $region84: #{tpu_custom_call.1} parent=1 // pred_region
      %201 = dma.done [#allocation6], 64
    $region85: #{tpu_custom_call.1} parent=1 // pred_fallthru
      _
    // Predicated region
    $region86: #{tpu_custom_call.1} parent=1 // pred_check
      _
    $region87: #{tpu_custom_call.1} parent=1 // pred_check_branch
      %203 = sbr.rel (0) target = $region89
    $region88: #{tpu_custom_call.1} parent=1 // pred_region
      %205 = dma.done [#allocation6], 32
    $region89: #{tpu_custom_call.1} parent=1 // pred_fallthru
      _
    // Predicated region
    $region90: #{tpu_custom_call.1} parent=1 // pred_check
      _
    $region91: #{tpu_custom_call.1} parent=1 // pred_check_branch
      %207 = sbr.rel (0) target = $region93
    $region92: #{tpu_custom_call.1} parent=1 // pred_region
      %209 = dma.done [#allocation9], 128
    $region93: #{tpu_custom_call.1} parent=1 // pred_fallthru
      _
    // Predicated region
    $region94: #{tpu_custom_call.1} parent=1 // pred_check
      _
    $region95: #{tpu_custom_call.1} parent=1 // pred_check_branch
      %211 = sbr.rel (0) target = $region97
    $region96: #{tpu_custom_call.1} parent=1 // pred_region
      %213 = dma.done [#allocation9], 16
    $region97: #{tpu_custom_call.1} parent=1 // pred_fallthru
      _
    // Predicated region
    $region98: #{tpu_custom_call.1} parent=1 // pred_check
      _
    $region99: #{tpu_custom_call.1} parent=1 // pred_check_branch
      %215 = sbr.rel (0) target = $region101
    $region100: #{tpu_custom_call.1} parent=1 // pred_region
      %217 = dma.done [#allocation12], 16
    $region101: #{tpu_custom_call.1} parent=1 // pred_fallthru
      _
    // Predicated region
    $region102: #{tpu_custom_call.1} parent=1 // pred_check
      _
    $region103: #{tpu_custom_call.1} parent=1 // pred_check_branch
      %219 = sbr.rel (0) target = $region105
    $region104: #{tpu_custom_call.1} parent=1 // pred_region
      %221 = dma.done [#allocation12], 16
    $region105: #{tpu_custom_call.1} parent=1 // pred_fallthru
      _
    // Predicated region
    $region106: #{tpu_custom_call.1} parent=1 // pred_check
      _
    $region107: #{tpu_custom_call.1} parent=1 // pred_check_branch
      %223 = sbr.rel (0) target = $region109
    $region108: #{tpu_custom_call.1} parent=1 // pred_region
      %225 = dma.done [#allocation15], 512
    $region109: #{tpu_custom_call.1} parent=1 // pred_fallthru
      _
    // Predicated region
    $region110: #{tpu_custom_call.1} parent=1 // pred_check
      _
    $region111: #{tpu_custom_call.1} parent=1 // pred_check_branch
      %227 = sbr.rel (0) target = $region113
    $region112: #{tpu_custom_call.1} parent=1 // pred_region
      %229 = dma.done [#allocation15], 16
    $region113: #{tpu_custom_call.1} parent=1 // pred_fallthru
      _
    // Predicated region
    $region114: #{tpu_custom_call.1} parent=1 // pred_check
      _
    $region115: #{tpu_custom_call.1} parent=1 // pred_check_branch
      %231 = sbr.rel (0) target = $region117
    $region116: #{tpu_custom_call.1} parent=1 // pred_region
      %233 = dma.done [#allocation18], 512
    $region117: #{tpu_custom_call.1} parent=1 // pred_fallthru
      _
    // Predicated region
    $region118: #{tpu_custom_call.1} parent=1 // pred_check
      _
    $region119: #{tpu_custom_call.1} parent=1 // pred_check_branch
      %235 = sbr.rel (0) target = $region121
    $region120: #{tpu_custom_call.1} parent=1 // pred_region
      %237 = dma.done [#allocation18], 16
    $region121: #{tpu_custom_call.1} parent=1 // pred_fallthru
      _
    // Predicated region
    $region122: #{tpu_custom_call.1} parent=1 // pred_check
      _
    $region123: #{tpu_custom_call.1} parent=1 // pred_check_branch
      %239 = sbr.rel (0) target = $region125
    $region124: #{tpu_custom_call.1} parent=1 // pred_region
      %241 = dma.done [#allocation21], 512
    $region125: #{tpu_custom_call.1} parent=1 // pred_fallthru
      _
    // Predicated region
    $region126: #{tpu_custom_call.1} parent=1 // pred_check
      _
    $region127: #{tpu_custom_call.1} parent=1 // pred_check_branch
      %243 = sbr.rel (0) target = $region129
    $region128: #{tpu_custom_call.1} parent=1 // pred_region
      %245 = dma.done [#allocation21], 16
    $region129: #{tpu_custom_call.1} parent=1 // pred_fallthru
      _
    %v247 = vld [vmem:[#allocation5] sm:$0xf]
    %v248 = vld [vmem:[#allocation3] sm:$0xf]
    %v249 = vld [vmem:[#allocation8] sm:$0x3f]
    %v250 = vld [vmem:[#allocation10] sm:$0x1]
    %v251 = vld [vmem:[%s5] sm:$0xff]
    %v252 = vld [vmem:[%s5 + $0x8] sm:$0xff]
    %v253 = vld [vmem:[%s5 + $0x10] sm:$0xff]
    %v254 = vld [vmem:[%s5 + $0x18] sm:$0xff]
    %v255 = vld [vmem:[#allocation11] sm:$0x1]
    %vm256 = vcmask 64512
    %v258 = vsel %vm256, %v247, 0
    %vm260 = vcmask 1043456
    %v262 = vsel %vm260, %v248, 0
    %264 = vmatpush.bf16.msra.mxu0 0
    %265 = vmatpush.bf16.msra.mxu0 0
    %266 = vmatpush.bf16.msra.mxu0 0
    %267 = vmatpush.bf16.msra.mxu0 0
    %268 = vmatpush.bf16.msra.mxu0 0
    %269 = vmatpush.bf16.msra.mxu0 0
    %270 = vmatpush.bf16.msra.mxu0 0
    %271 = vmatpush.bf16.msra.mxu0 %v262
    %272 = vmatmul.bf16.gmra.mxu0 %v258
    %v273 = vpop.f32.mrf.mxu0
    %v274 = vadd.f32 0.0, %v273
    %v275 = vpop.f32.mrf.mxu0
    %276 = vdwg.mxu0
    %v278 = vperm.slane %v250, 0
    %vm280 = vcmask 48128
    %v282 = vsel %vm280, %v274, 0
    %vm284 = vcmask 1045504
    %v286 = vsel %vm284, %v249, 0
    %288 = vmatpush.msra.mxu0 0.0
    %289 = vmatpush.msra.mxu0 0.0
    %290 = vmatpush.msra.mxu0 0.0
    %291 = vmatpush.msra.mxu0 0.0
    %292 = vmatpush.msra.mxu0 0.0
    %293 = vmatpush.msra.mxu0 0.0
    %294 = vmatpush.msra.mxu0 0.0
    %295 = vmatpush.msra.mxu0 0.0
    %296 = vmatpush.msra.mxu0 0.0
    %297 = vmatpush.msra.mxu0 0.0
    %298 = vmatpush.msra.mxu0 0.0
    %299 = vmatpush.msra.mxu0 0.0
    %300 = vmatpush.msra.mxu0 0.0
    %301 = vmatpush.msra.mxu0 0.0
    %302 = vmatpush.msra.mxu0 0.0
    %303 = vmatpush.msra.mxu0 %v286
    %304 = vmatmul.f32.gmra.mxu0 %v282
    %v305 = vpop.f32.mrf.mxu0
    %v306 = vadd.f32 %v278, %v305
    %307 = vdwg.mxu0
    %v308 = vmax.f32 %v306, 0.0
    %v310 = vperm.slane %v255, 0
    %vm312 = vcmask 261120
    %v314 = vsel %vm312, %v308, 0
    %316 = vmatpush.msra.mxu0 0.0
    %317 = vmatpush.msra.mxu0 0.0
    %318 = vmatpush.msra.mxu0 0.0
    %319 = vmatpush.msra.mxu0 0.0
    %320 = vmatpush.msra.mxu0 0.0
    %321 = vmatpush.msra.mxu0 0.0
    %322 = vmatpush.msra.mxu0 0.0
    %323 = vmatpush.msra.mxu0 0.0
    %324 = vmatpush.msra.mxu0 0.0
    %325 = vmatpush.msra.mxu0 0.0
    %326 = vmatpush.msra.mxu0 0.0
    %327 = vmatpush.msra.mxu0 0.0
    %328 = vmatpush.msra.mxu0 %v254
    %329 = vmatpush.msra.mxu0 %v253
    %330 = vmatpush.msra.mxu0 %v252
    %331 = vmatpush.msra.mxu0 %v251
    %332 = vmatmul.f32.gmra.mxu0 %v314
    %v333 = vpop.f32.mrf.mxu0
    %v334 = vadd.f32 %v310, %v333
    %335 = vdwg.mxu0
    %v336 = vpack.c.bf16 %v334, %v334
    %v337 = vld [vmem:[%s7] sm:$0xff]
    %v338 = vld [vmem:[%s7 + $0x8] sm:$0xff]
    %v339 = vld [vmem:[%s7 + $0x10] sm:$0xff]
    %v340 = vld [vmem:[%s7 + $0x18] sm:$0xff]
    %v341 = vld [vmem:[#allocation13] sm:$0x1]
    %v342 = vld [vmem:[#allocation14] sm:$0xff]
    %v343 = vld [vmem:[#allocation14 + $0x8] sm:$0xff]
    %v344 = vld [vmem:[#allocation14 + $0x10] sm:$0xff]
    %v345 = vld [vmem:[#allocation14 + $0x18] sm:$0xff]
    %v346 = vld [vmem:[#allocation16] sm:$0x1]
    %v348 = vsel %vm260, %v336, 0
    %350 = vmatpush.bf16.msra.mxu0 0
    %351 = vmatpush.bf16.msra.mxu0 0
    %352 = vmatpush.bf16.msra.mxu0 0
    %353 = vmatpush.bf16.msra.mxu0 0
    %354 = vmatpush.bf16.msra.mxu0 0
    %355 = vmatpush.bf16.msra.mxu0 0
    %356 = vmatpush.bf16.msra.mxu0 0
    %357 = vmatpush.bf16.msra.mxu0 %v348
    %358 = vmatmul.bf16.gmra.mxu0 %v258
    %v359 = vpop.f32.mrf.mxu0
    %v360 = vadd.f32 0.0, %v359
    %v361 = vpop.f32.mrf.mxu0
    %362 = vdwg.mxu0
    %v364 = vperm.slane %v341, 0
    %v367 = vsel %vm312, %v360, 0
    %369 = vmatpush.msra.mxu0 0.0
    %370 = vmatpush.msra.mxu0 0.0
    %371 = vmatpush.msra.mxu0 0.0
    %372 = vmatpush.msra.mxu0 0.0
    %373 = vmatpush.msra.mxu0 0.0
    %374 = vmatpush.msra.mxu0 0.0
    %375 = vmatpush.msra.mxu0 0.0
    %376 = vmatpush.msra.mxu0 0.0
    %377 = vmatpush.msra.mxu0 0.0
    %378 = vmatpush.msra.mxu0 0.0
    %379 = vmatpush.msra.mxu0 0.0
    %380 = vmatpush.msra.mxu0 0.0
    %381 = vmatpush.msra.mxu0 %v340
    %382 = vmatpush.msra.mxu0 %v339
    %383 = vmatpush.msra.mxu0 %v338
    %384 = vmatpush.msra.mxu0 %v337
    %385 = vmatmul.f32.gmra.mxu0 %v367
    %v386 = vpop.f32.mrf.mxu0
    %v387 = vadd.f32 %v364, %v386
    %388 = vdwg.mxu0
    %v389 = vmax.f32 %v387, 0.0
    %v391 = vperm.slane %v346, 0
    %v394 = vsel %vm312, %v389, 0
    %396 = vmatpush.msra.mxu0 0.0
    %397 = vmatpush.msra.mxu0 0.0
    %398 = vmatpush.msra.mxu0 0.0
    %399 = vmatpush.msra.mxu0 0.0
    %400 = vmatpush.msra.mxu0 0.0
    %401 = vmatpush.msra.mxu0 0.0
    %402 = vmatpush.msra.mxu0 0.0
    %403 = vmatpush.msra.mxu0 0.0
    %404 = vmatpush.msra.mxu0 0.0
    %405 = vmatpush.msra.mxu0 0.0
    %406 = vmatpush.msra.mxu0 0.0
    %407 = vmatpush.msra.mxu0 0.0
    %408 = vmatpush.msra.mxu0 %v345
    %409 = vmatpush.msra.mxu0 %v344
    %410 = vmatpush.msra.mxu0 %v343
    %411 = vmatpush.msra.mxu0 %v342
    %412 = vmatmul.f32.gmra.mxu0 %v394
    %v413 = vpop.f32.mrf.mxu0
    %v414 = vadd.f32 %v391, %v413
    %415 = vdwg.mxu0
    %v416 = vpack.c.bf16 %v414, %v414
    %v417 = vld [vmem:[#allocation17] sm:$0xff]
    %v418 = vld [vmem:[#allocation17 + $0x8] sm:$0xff]
    %v419 = vld [vmem:[#allocation17 + $0x10] sm:$0xff]
    %v420 = vld [vmem:[#allocation17 + $0x18] sm:$0xff]
    %v421 = vld [vmem:[#allocation19] sm:$0x1]
    %v422 = vld [vmem:[#allocation20] sm:$0xff]
    %v423 = vld [vmem:[#allocation20 + $0x8] sm:$0xff]
    %v424 = vld [vmem:[#allocation20 + $0x10] sm:$0xff]
    %v425 = vld [vmem:[#allocation20 + $0x18] sm:$0xff]
    %v426 = vld [vmem:[#allocation22] sm:$0x1]
    %v428 = vsel %vm260, %v416, 0
    %430 = vmatpush.bf16.msra.mxu0 0
    %431 = vmatpush.bf16.msra.mxu0 0
    %432 = vmatpush.bf16.msra.mxu0 0
    %433 = vmatpush.bf16.msra.mxu0 0
    %434 = vmatpush.bf16.msra.mxu0 0
    %435 = vmatpush.bf16.msra.mxu0 0
    %436 = vmatpush.bf16.msra.mxu0 0
    %437 = vmatpush.bf16.msra.mxu0 %v428
    %438 = vmatmul.bf16.gmra.mxu0 %v258
    %v439 = vpop.f32.mrf.mxu0
    %v440 = vadd.f32 0.0, %v439
    %v441 = vpop.f32.mrf.mxu0
    %442 = vdwg.mxu0
    %v444 = vperm.slane %v421, 0
    %v447 = vsel %vm312, %v440, 0
    %449 = vmatpush.msra.mxu0 0.0
    %450 = vmatpush.msra.mxu0 0.0
    %451 = vmatpush.msra.mxu0 0.0
    %452 = vmatpush.msra.mxu0 0.0
    %453 = vmatpush.msra.mxu0 0.0
    %454 = vmatpush.msra.mxu0 0.0
    %455 = vmatpush.msra.mxu0 0.0
    %456 = vmatpush.msra.mxu0 0.0
    %457 = vmatpush.msra.mxu0 0.0
    %458 = vmatpush.msra.mxu0 0.0
    %459 = vmatpush.msra.mxu0 0.0
    %460 = vmatpush.msra.mxu0 0.0
    %461 = vmatpush.msra.mxu0 %v420
    %462 = vmatpush.msra.mxu0 %v419
    %463 = vmatpush.msra.mxu0 %v418
    %464 = vmatpush.msra.mxu0 %v417
    %465 = vmatmul.f32.gmra.mxu0 %v447
    %v466 = vpop.f32.mrf.mxu0
    %v467 = vadd.f32 %v444, %v466
    %468 = vdwg.mxu0
    %v469 = vmax.f32 %v467, 0.0
    %v471 = vperm.slane %v426, 0
    %v474 = vsel %vm312, %v469, 0
    %476 = vmatpush.msra.mxu0 0.0
    %477 = vmatpush.msra.mxu0 0.0
    %478 = vmatpush.msra.mxu0 0.0
    %479 = vmatpush.msra.mxu0 0.0
    %480 = vmatpush.msra.mxu0 0.0
    %481 = vmatpush.msra.mxu0 0.0
    %482 = vmatpush.msra.mxu0 0.0
    %483 = vmatpush.msra.mxu0 0.0
    %484 = vmatpush.msra.mxu0 0.0
    %485 = vmatpush.msra.mxu0 0.0
    %486 = vmatpush.msra.mxu0 0.0
    %487 = vmatpush.msra.mxu0 0.0
    %488 = vmatpush.msra.mxu0 %v425
    %489 = vmatpush.msra.mxu0 %v424
    %490 = vmatpush.msra.mxu0 %v423
    %491 = vmatpush.msra.mxu0 %v422
    %492 = vmatmul.f32.gmra.mxu0 %v474
    %v493 = vpop.f32.mrf.mxu0
    %v494 = vadd.f32 %v471, %v493
    %495 = vdwg.mxu0
    %v496 = vld [vmem:[#allocation7] sm:$0x3]
    %v498 = vsel %vm256, %v496, 0
    %500 = vmatpush.msra.mxu0 0.0
    %501 = vmatpush.msra.mxu0 0.0
    %502 = vmatpush.msra.mxu0 0.0
    %503 = vmatpush.msra.mxu0 0.0
    %504 = vmatpush.msra.mxu0 0.0
    %505 = vmatpush.msra.mxu0 0.0
    %506 = vmatpush.msra.mxu0 0.0
    %507 = vmatpush.msra.mxu0 0.0
    %508 = vmatpush.msra.mxu0 0.0
    %509 = vmatpush.msra.mxu0 0.0
    %510 = vmatpush.msra.mxu0 0.0
    %511 = vmatpush.msra.mxu0 0.0
    %512 = vmatpush.msra.mxu0 0.0
    %513 = vmatpush.msra.mxu0 0.0
    %514 = vmatpush.msra.mxu0 0.0
    %515 = vmatpush.msra.mxu0 %v494
    %516 = vmatmul.f32.gmra.mxu0 %v498
    %v517 = vpop.f32.mrf.mxu0
    %v518 = vadd.f32 0.0, %v517
    %519 = vdwg.mxu0
    %v520 = vld [vmem:[%s15] sm:$0xff]
    %v521 = vld [vmem:[%s15 + $0x8] sm:$0xff]
    %v522 = vld [vmem:[%s15 + $0x10] sm:$0xff]
    %v523 = vld [vmem:[%s15 + $0x18] sm:$0xff]
    %v524 = vld [vmem:[%s16] sm:$0x1]
    %v526 = vperm.slane %v524, 0
    %v529 = vsel %vm312, %v518, 0
    %531 = vmatpush.msra.mxu0 0.0
    %532 = vmatpush.msra.mxu0 0.0
    %533 = vmatpush.msra.mxu0 0.0
    %534 = vmatpush.msra.mxu0 0.0
    %535 = vmatpush.msra.mxu0 0.0
    %536 = vmatpush.msra.mxu0 0.0
    %537 = vmatpush.msra.mxu0 0.0
    %538 = vmatpush.msra.mxu0 0.0
    %539 = vmatpush.msra.mxu0 0.0
    %540 = vmatpush.msra.mxu0 0.0
    %541 = vmatpush.msra.mxu0 0.0
    %542 = vmatpush.msra.mxu0 0.0
    %543 = vmatpush.msra.mxu0 %v523
    %544 = vmatpush.msra.mxu0 %v522
    %545 = vmatpush.msra.mxu0 %v521
    %546 = vmatpush.msra.mxu0 %v520
    %547 = vmatmul.f32.gmra.mxu0 %v529
    %v548 = vpop.f32.mrf.mxu0
    %v549 = vadd.f32 %v526, %v548
    %550 = vdwg.mxu0
    %v551 = vmax.f32 %v549, 0.0
    %v552 = vld [vmem:[%s17] sm:$0xff]
    %v553 = vld [vmem:[%s17 + $0x8] sm:$0xff]
    %v554 = vld [vmem:[#allocation2] sm:$0x1]
    %v556 = vperm.slane %v554, 0
    %vm558 = vcmask 130048
    %v560 = vsel %vm558, %v551, 0
    %562 = vmatpush.msra.mxu0 0.0
    %563 = vmatpush.msra.mxu0 0.0
    %564 = vmatpush.msra.mxu0 0.0
    %565 = vmatpush.msra.mxu0 0.0
    %566 = vmatpush.msra.mxu0 0.0
    %567 = vmatpush.msra.mxu0 0.0
    %568 = vmatpush.msra.mxu0 0.0
    %569 = vmatpush.msra.mxu0 0.0
    %570 = vmatpush.msra.mxu0 0.0
    %571 = vmatpush.msra.mxu0 0.0
    %572 = vmatpush.msra.mxu0 0.0
    %573 = vmatpush.msra.mxu0 0.0
    %574 = vmatpush.msra.mxu0 0.0
    %575 = vmatpush.msra.mxu0 0.0
    %576 = vmatpush.msra.mxu0 %v553
    %577 = vmatpush.msra.mxu0 %v552
    %578 = vmatmul.f32.gmra.mxu0 %v560
    %v579 = vpop.f32.mrf.mxu0
    %v580 = vadd.f32 %v556, %v579
    %581 = vdwg.mxu0
    %v582 = vsub.f32 0.0, %v580
    %v583 = vmul.f32 %v582, 1.442695
    %v584 = vpow.pop %v583
    %v585 = vadd.f32 %v584, 1.0
    %v586 = vrcp.pop %v585
    %v587 = vmul.f32 %v585, %v586
    %v588 = vsub.f32 1.0, %v587
    %v589 = vmul.f32 %v586, %v588
    %v590 = vadd.f32 %v586, %v589
    %vm591 = vweird.f32 %v585
    %vm592 = vweird.f32 %v586
    %vm593 = vmor %vm591, %vm592
    %v594 = vsel %vm593, %v586, %v590
    %v595 = vand.u32 2147483647, %v585
    %vm596 = vcmp.eq.f32.partialorder %v595, 8.507059e+37
    %v597 = vand.u32 %v585, 2147483648
    %v598 = vor.u32 1.1754944e-38, %v597
    %v599 = vsel %vm596, %v598, %v594
    %v600 = vmul.f32 1.0, %v599
    %vm601 = vcmask 1024
    %602 = vst.msk [vmem:[%s19] sm:$0x3] %vm601, %v600
    // Predicated region
    $region130: #{tpu_custom_call.1} parent=1 // pred_check
      _
    $region131: #{tpu_custom_call.1} parent=1 // pred_check_branch
      %604 = sbr.rel (0) target = $region133
    $region132: #{tpu_custom_call.1} parent=1 // pred_region
      _
    $region133: #{tpu_custom_call.1} parent=1 // pred_fallthru
      _
    // Predicated region
    $region134: #{tpu_custom_call.1} parent=1 // pred_check
      _
    $region135: #{tpu_custom_call.1} parent=1 // pred_check_branch
      %606 = sbr.rel (0) target = $region137
    $region136: #{tpu_custom_call.1} parent=1 // pred_region
      _
    $region137: #{tpu_custom_call.1} parent=1 // pred_fallthru
      _
    %607 = vsyncpa [#allocation4], 1
    %608 = vsyncpa [#allocation6], 1
    %609 = vsyncpa [#allocation9], 1
    %610 = vsyncpa [#allocation12], 1
    %611 = vsyncpa [#allocation15], 1
    %612 = vsyncpa [#allocation18], 1
    %613 = vsyncpa [#allocation21], 1

</llo_original>
